<compile_context>
chip_gen: v7x
topology: tpu7x:2x2x1
jax: 0.10.0
libtpu: 0.0.40
codegen_flags: <defaults>
</compile_context>

<pallas_src>
import jax
import jax.numpy as jnp
from jax.experimental import pallas as pl
from jax.experimental.pallas import tpu as pltpu

ALPHA = 0.25
GAMMA = 2.0
IGNORE_INDEX = 6
NEG_INF = -1e30          # finite: 0 * NEG_INF == 0, so the one-hot gather never produces NaN
CPAD = 8                 # classes padded to one full sublane group
NUM_CORES = 2            # leading "parallel" grid axis; harmless on 1-TC chips
TM_MAX = 32768           # 8 x 32768 f32 = 1 MiB logits tile (+128 KiB targets) per buffer


def _round_up(x, m):
    return ((x + m - 1) // m) * m


def focal_partial_kernel(x_ref, t_ref, o_ref, sum_acc, cnt_acc):
    # x_ref: (8, TM) f32 logits (classes on sublanes), t_ref: (1, TM) i32 targets,
    # o_ref: (1, 8, 128) f32 per-core partials, scratch sum_acc/cnt_acc: (1, TM) f32.
    step = pl.program_id(1)

    @pl.when(step == 0)
    def _init():
        sum_acc[...] = jnp.zeros_like(sum_acc)
        cnt_acc[...] = jnp.zeros_like(cnt_acc)
        o_ref[...] = jnp.zeros_like(o_ref)

    x = x_ref[...]                                   # (8, TM) f32
    t = t_ref[...]                                   # (1, TM) i32

    # numerically-stable log-sum-exp over the 8-deep sublane (class) axis
    m = jnp.max(x, axis=0, keepdims=True)            # (1, TM)  XLU
    lse = m + jnp.log(jnp.sum(jnp.exp(x - m), axis=0, keepdims=True))   # EUP + XLU

    # gather x[target] via one-hot over sublanes; padded class 7 never matches a target
    cls = jax.lax.broadcasted_iota(jnp.int32, x.shape, 0)   # (8, TM)
    gathered = jnp.sum(jnp.where(cls == t, x, 0.0), axis=0, keepdims=True)  # (1, TM)

    valid = (t != IGNORE_INDEX).astype(jnp.float32)  # padded pixels carry IGNORE_INDEX
    sum_acc[...] += valid * (lse - gathered)
    cnt_acc[...] += valid

    @pl.when(step == pl.num_programs(1) - 1)
    def _finalize():
        s = jnp.sum(sum_acc[...])                    # cross-lane reduce (XLU), once per core
        c = jnp.sum(cnt_acc[...])
        sub = jax.lax.broadcasted_iota(jnp.int32, o_ref.shape, 1)
        lane = jax.lax.broadcasted_iota(jnp.int32, o_ref.shape, 2)
        o_ref[...] = jnp.where((sub == 0) & (lane == 0), s,
                               jnp.where((sub == 0) & (lane == 1), c, 0.0))


def focal_loss(inputs, targets):
    """inputs: (N, C, H, W) float32 logits; targets: (N, H, W) int class ids. Returns scalar f32."""
    N, C, H, W = inputs.shape
    assert C <= CPAD
    M = N * H * W

    tm = min(TM_MAX, _round_up(pl.cdiv(M, NUM_CORES), 128))
    steps = pl.cdiv(M, NUM_CORES * tm)               # reduction-axis length per core
    m_pad = NUM_CORES * steps * tm

    # classes -> sublanes (pad with NEG_INF), pixels -> lanes (pad with 0 / IGNORE_INDEX)
    x = jnp.transpose(inputs, (1, 0, 2, 3)).reshape(C, M).astype(jnp.float32)
    x = jnp.pad(x, ((0, CPAD - C), (0, 0)), constant_values=NEG_INF)
    x = jnp.pad(x, ((0, 0), (0, m_pad - M)))
    t = targets.reshape(1, M).astype(jnp.int32)
    t = jnp.pad(t, ((0, 0), (0, m_pad - M)), constant_values=IGNORE_INDEX)

    partials = pl.pallas_call(
        focal_partial_kernel,
        out_shape=jax.ShapeDtypeStruct((NUM_CORES, 8, 128), jnp.float32),
        grid_spec=pltpu.PrefetchScalarGridSpec(
            num_scalar_prefetch=0,
            grid=(NUM_CORES, steps),
            in_specs=[
                pl.BlockSpec((CPAD, tm), lambda c, i: (0, c * steps + i)),
                pl.BlockSpec((1, tm), lambda c, i: (0, c * steps + i)),
            ],
            out_specs=pl.BlockSpec((1, 8, 128), lambda c, i: (c, 0, 0)),
            scratch_shapes=[
                pltpu.VMEM((1, tm), jnp.float32),
                pltpu.VMEM((1, tm), jnp.float32),
            ],
        ),
        compiler_params=pltpu.CompilerParams(
            dimension_semantics=("parallel", "arbitrary"),
        ),
    )(x, t)

    loss_sum = jnp.sum(partials[:, 0, 0])
    count = jnp.sum(partials[:, 0, 1])
    # NOTE: if every pixel is ignored, count == 0 and ce is NaN — matches PyTorch semantics.
    ce = loss_sum / count
    return ALPHA * (1.0 - jnp.exp(-ce)) ** GAMMA * ce


def focal_loss_ref(inputs, targets):
    # pure-JAX reference for sanity
    N, C, H, W = inputs.shape
    x = jnp.transpose(inputs, (0, 2, 3, 1)).reshape(-1, C).astype(jnp.float32)
    t = targets.reshape(-1).astype(jnp.int32)
    logp = jax.nn.log_softmax(x, axis=-1)
    per = -jnp.take_along_axis(logp, t[:, None], axis=-1)[:, 0]
    valid = t != IGNORE_INDEX
    ce = jnp.sum(jnp.where(valid, per, 0.0)) / jnp.sum(valid.astype(jnp.float32))
    return ALPHA * (1.0 - jnp.exp(-ce)) ** GAMMA * ce


if __name__ == "__main__":
    key = jax.random.PRNGKey(0)
    k1, k2 = jax.random.split(key)
    # segmentation-style shapes: batch=2, 7 classes (class 6 is ignored), 16x16 spatial
    inputs = jax.random.normal(k1, (2, 7, 16, 16), dtype=jnp.float32)
    targets = jax.random.randint(k2, (2, 16, 16), 0, 7, dtype=jnp.int32)

    out = focal_loss(inputs, targets)
    out = jax.block_until_ready(out)

    ref = focal_loss_ref(inputs, targets)
    assert jnp.allclose(out, ref, atol=1e-5, rtol=1e-5), (out, ref)
    print("KERNEL_OK")
</pallas_src>

<mosaic_0001>
module attributes {stable_mosaic.version = 11 : i64} {
  func.func @focal_partial_kernel(%arg0: i32, %arg1: i32, %arg2: memref<8x256xf32, #tpu.memory_space<vmem>>, %arg3: memref<1x256xi32, #tpu.memory_space<vmem>>, %arg4: memref<1x8x128xf32, #tpu.memory_space<vmem>>, %arg5: memref<1x256xf32, #tpu.memory_space<vmem>>, %arg6: memref<1x256xf32, #tpu.memory_space<vmem>>) attributes {dimension_semantics = [#tpu.dimension_semantics<parallel>, #tpu.dimension_semantics<arbitrary>], iteration_bounds = array<i64: 2, 1>, scalar_prefetch = 0 : i64, scratch_operands = 2 : i64, tpu.core_type = #tpu.core_type<tc>, window_params = [{transform_indices = @transform_0, window_bounds = array<i64: 8, 256>}, {transform_indices = @transform_1, window_bounds = array<i64: 1, 256>}, {transform_indices = @transform_2, window_bounds = array<i64: 1, 8, 128>}]} {
    %c0_i32 = arith.constant 0 : i32
    %0 = arith.cmpi eq, %arg1, %c0_i32 : i32
    %1 = arith.extui %0 : i1 to i32
    %c0_i32_0 = arith.constant 0 : i32
    %2 = arith.cmpi ne, %1, %c0_i32_0 : i32
    scf.if %2 {
      %cst_17 = arith.constant 0.000000e+00 : f32
      %36 = vector.broadcast %cst_17 : f32 to vector<1x256xf32>
      %c0_18 = arith.constant 0 : index
      %c0_19 = arith.constant 0 : index
      %37 = vector.load %arg5[%c0_18, %c0_19] : memref<1x256xf32, #tpu.memory_space<vmem>>, vector<1x256xf32>
      tpu.vector_store %arg5[%c0_18, %c0_19], %36 {strides = array<i32>} : memref<1x256xf32, #tpu.memory_space<vmem>>, vector<1x256xf32>,
      %cst_20 = arith.constant 0.000000e+00 : f32
      %38 = vector.broadcast %cst_20 : f32 to vector<1x256xf32>
      %c0_21 = arith.constant 0 : index
      %c0_22 = arith.constant 0 : index
      %39 = vector.load %arg6[%c0_21, %c0_22] : memref<1x256xf32, #tpu.memory_space<vmem>>, vector<1x256xf32>
      tpu.vector_store %arg6[%c0_21, %c0_22], %38 {strides = array<i32>} : memref<1x256xf32, #tpu.memory_space<vmem>>, vector<1x256xf32>,
      %cst_23 = arith.constant 0.000000e+00 : f32
      %40 = vector.broadcast %cst_23 : f32 to vector<1x8x128xf32>
      %c0_24 = arith.constant 0 : index
      %c0_25 = arith.constant 0 : index
      %c0_26 = arith.constant 0 : index
      %41 = vector.load %arg4[%c0_24, %c0_25, %c0_26] : memref<1x8x128xf32, #tpu.memory_space<vmem>>, vector<1x8x128xf32>
      tpu.vector_store %arg4[%c0_24, %c0_25, %c0_26], %40 {strides = array<i32>} : memref<1x8x128xf32, #tpu.memory_space<vmem>>, vector<1x8x128xf32>,
    } else {
    }
    %c0 = arith.constant 0 : index
    %c0_1 = arith.constant 0 : index
    %3 = vector.load %arg2[%c0, %c0_1] : memref<8x256xf32, #tpu.memory_space<vmem>>, vector<8x256xf32>
    %c0_2 = arith.constant 0 : index
    %c0_3 = arith.constant 0 : index
    %4 = vector.load %arg3[%c0_2, %c0_3] : memref<1x256xi32, #tpu.memory_space<vmem>>, vector<1x256xi32>
    %cst = arith.constant dense<0xFF800000> : vector<256xf32>
    %5 = vector.multi_reduction <maximumf>, %3, %cst [0] : vector<8x256xf32> to vector<256xf32>
    %6 = vector.shape_cast %5 : vector<256xf32> to vector<1x256xf32>
    %7 = vector.broadcast %6 : vector<1x256xf32> to vector<8x256xf32>
    %8 = arith.subf %3, %7 : vector<8x256xf32>
    %9 = math.exp %8 : vector<8x256xf32>
    %cst_4 = arith.constant dense<0.000000e+00> : vector<256xf32>
    %10 = vector.multi_reduction <add>, %9, %cst_4 [0] : vector<8x256xf32> to vector<256xf32>
    %11 = vector.shape_cast %10 : vector<256xf32> to vector<1x256xf32>
    %12 = math.log %11 : vector<1x256xf32>
    %13 = arith.addf %6, %12 : vector<1x256xf32>
    %14 = tpu.iota {dimensions = array<i32: 0>} : vector<8x256xi32>
    %15 = vector.broadcast %4 : vector<1x256xi32> to vector<8x256xi32>
    %16 = arith.cmpi eq, %14, %15 : vector<8x256xi32>
    %cst_5 = arith.constant 0.000000e+00 : f32
    %17 = vector.broadcast %cst_5 : f32 to vector<8x256xf32>
    %18 = arith.select %16, %3, %17 : vector<8x256xi1>, vector<8x256xf32>
    %cst_6 = arith.constant dense<0.000000e+00> : vector<256xf32>
    %19 = vector.multi_reduction <add>, %18, %cst_6 [0] : vector<8x256xf32> to vector<256xf32>
    %20 = vector.shape_cast %19 : vector<256xf32> to vector<1x256xf32>
    %c6_i32 = arith.constant 6 : i32
    %21 = vector.broadcast %c6_i32 : i32 to vector<1x256xi32>
    %22 = arith.cmpi ne, %4, %21 : vector<1x256xi32>
    %23 = arith.extui %22 : vector<1x256xi1> to vector<1x256xi32>
    %24 = arith.sitofp %23 : vector<1x256xi32> to vector<1x256xf32>
    %c0_7 = arith.constant 0 : index
    %c0_8 = arith.constant 0 : index
    %25 = vector.load %arg5[%c0_7, %c0_8] : memref<1x256xf32, #tpu.memory_space<vmem>>, vector<1x256xf32>
    %26 = arith.subf %13, %20 : vector<1x256xf32>
    %27 = arith.mulf %24, %26 : vector<1x256xf32>
    %28 = arith.addf %25, %27 : vector<1x256xf32>
    %c0_9 = arith.constant 0 : index
    %c0_10 = arith.constant 0 : index
    %29 = vector.load %arg5[%c0_9, %c0_10] : memref<1x256xf32, #tpu.memory_space<vmem>>, vector<1x256xf32>
    tpu.vector_store %arg5[%c0_9, %c0_10], %28 {strides = array<i32>} : memref<1x256xf32, #tpu.memory_space<vmem>>, vector<1x256xf32>,
    %c0_11 = arith.constant 0 : index
    %c0_12 = arith.constant 0 : index
    %30 = vector.load %arg6[%c0_11, %c0_12] : memref<1x256xf32, #tpu.memory_space<vmem>>, vector<1x256xf32>
    %31 = arith.addf %30, %24 : vector<1x256xf32>
    %c0_13 = arith.constant 0 : index
    %c0_14 = arith.constant 0 : index
    %32 = vector.load %arg6[%c0_13, %c0_14] : memref<1x256xf32, #tpu.memory_space<vmem>>, vector<1x256xf32>
    tpu.vector_store %arg6[%c0_13, %c0_14], %31 {strides = array<i32>} : memref<1x256xf32, #tpu.memory_space<vmem>>, vector<1x256xf32>,
    %c0_i32_15 = arith.constant 0 : i32
    %33 = arith.cmpi eq, %arg1, %c0_i32_15 : i32
    %34 = arith.extui %33 : i1 to i32
    %c0_i32_16 = arith.constant 0 : i32
    %35 = arith.cmpi ne, %34, %c0_i32_16 : i32
    scf.if %35 {
      %c0_17 = arith.constant 0 : index
      %c0_18 = arith.constant 0 : index
      %36 = vector.load %arg5[%c0_17, %c0_18] : memref<1x256xf32, #tpu.memory_space<vmem>>, vector<1x256xf32>
      %37 = vector.shape_cast %36 : vector<1x256xf32> to vector<1x1x256xf32>
      %cst_19 = arith.constant dense<0.000000e+00> : vector<1xf32>
      %38 = vector.multi_reduction <add>, %37, %cst_19 [1, 2] : vector<1x1x256xf32> to vector<1xf32>
      %39 = vector.shape_cast %38 : vector<1xf32> to vector<1x1x1xf32>
      %40 = vector.extract %39[0, 0, 0] : f32 from vector<1x1x1xf32>
      %c0_20 = arith.constant 0 : index
      %c0_21 = arith.constant 0 : index
      %41 = vector.load %arg6[%c0_20, %c0_21] : memref<1x256xf32, #tpu.memory_space<vmem>>, vector<1x256xf32>
      %42 = vector.shape_cast %41 : vector<1x256xf32> to vector<1x1x256xf32>
      %cst_22 = arith.constant dense<0.000000e+00> : vector<1xf32>
      %43 = vector.multi_reduction <add>, %42, %cst_22 [1, 2] : vector<1x1x256xf32> to vector<1xf32>
      %44 = vector.shape_cast %43 : vector<1xf32> to vector<1x1x1xf32>
      %45 = vector.extract %44[0, 0, 0] : f32 from vector<1x1x1xf32>
      %46 = tpu.iota {dimensions = array<i32: 1>} : vector<1x8x128xi32>
      %47 = tpu.iota {dimensions = array<i32: 2>} : vector<1x8x128xi32>
      %c0_i32_23 = arith.constant 0 : i32
      %48 = vector.broadcast %c0_i32_23 : i32 to vector<1x8x128xi32>
      %49 = arith.cmpi eq, %46, %48 : vector<1x8x128xi32>
      %c0_i32_24 = arith.constant 0 : i32
      %50 = vector.broadcast %c0_i32_24 : i32 to vector<1x8x128xi32>
      %51 = arith.cmpi eq, %47, %50 : vector<1x8x128xi32>
      %52 = arith.andi %49, %51 : vector<1x8x128xi1>
      %c0_i32_25 = arith.constant 0 : i32
      %53 = vector.broadcast %c0_i32_25 : i32 to vector<1x8x128xi32>
      %54 = arith.cmpi eq, %46, %53 : vector<1x8x128xi32>
      %c1_i32 = arith.constant 1 : i32
      %55 = vector.broadcast %c1_i32 : i32 to vector<1x8x128xi32>
      %56 = arith.cmpi eq, %47, %55 : vector<1x8x128xi32>
      %57 = arith.andi %54, %56 : vector<1x8x128xi1>
      %cst_26 = arith.constant 0.000000e+00 : f32
      %58 = vector.broadcast %45 : f32 to vector<1x8x128xf32>
      %59 = vector.broadcast %cst_26 : f32 to vector<1x8x128xf32>
      %60 = arith.select %57, %58, %59 : vector<1x8x128xi1>, vector<1x8x128xf32>
      %61 = vector.broadcast %40 : f32 to vector<1x8x128xf32>
      %62 = arith.select %52, %61, %60 : vector<1x8x128xi1>, vector<1x8x128xf32>
      %c0_27 = arith.constant 0 : index
      %c0_28 = arith.constant 0 : index
      %c0_29 = arith.constant 0 : index
      %63 = vector.load %arg4[%c0_27, %c0_28, %c0_29] : memref<1x8x128xf32, #tpu.memory_space<vmem>>, vector<1x8x128xf32>
      tpu.vector_store %arg4[%c0_27, %c0_28, %c0_29], %62 {strides = array<i32>} : memref<1x8x128xf32, #tpu.memory_space<vmem>>, vector<1x8x128xf32>,
    } else {
    }
    return
  }
  func.func @transform_0(%arg0: i32, %arg1: i32) -> (i32, i32) {
    %c1_i32 = arith.constant 1 : i32
    %0 = arith.muli %arg0, %c1_i32 : i32
    %1 = arith.addi %0, %arg1 : i32
    %c0_i32 = arith.constant 0 : i32
    %c0_i32_0 = arith.constant 0 : i32
    return %c0_i32, %1 : i32, i32
  }
  func.func @transform_1(%arg0: i32, %arg1: i32) -> (i32, i32) {
    %c1_i32 = arith.constant 1 : i32
    %0 = arith.muli %arg0, %c1_i32 : i32
    %1 = arith.addi %0, %arg1 : i32
    %c0_i32 = arith.constant 0 : i32
    %c0_i32_0 = arith.constant 0 : i32
    return %c0_i32, %1 : i32, i32
  }
  func.func @transform_2(%arg0: i32, %arg1: i32) -> (i32, i32, i32) {
    %c0_i32 = arith.constant 0 : i32
    %c0_i32_0 = arith.constant 0 : i32
    %c0_i32_1 = arith.constant 0 : i32
    return %arg0, %c0_i32, %c0_i32_0 : i32, i32, i32
  }
}

</mosaic_0001>

<llo_original>
// kernel: tpu_custom_call.1
$region0: #{tpu_custom_call.1}
  #allocation0 [shape = 'u32[]', space=smem, size = 0x4, offset = 0x4, fixed_abs, tag = 'smem constant byte address 0x4 - core index']
  #allocation1 [shape = 'u32[144,128]{1,0:T(1,128)}', space=vmem, size = 0x12000, scoped, tag = 'internal scratch']
  #allocation2 [shape = 'f32[1,256]{1,0:T(1,128)}', space=vmem, size = 0x400, scoped, tag = 'scratch operand']
  #allocation3 [shape = 'f32[1,256]{1,0:T(1,128)}', space=vmem, size = 0x400, scoped, tag = 'scratch operand']
  %s0 = inlined_call_operand.hbm [shape: f32[8,512], index: 0, kind: input, shape index: {}]
  %s1 = inlined_call_operand.hbm [shape: s32[1,512], index: 1, kind: input, shape index: {}]
  %s2 = inlined_call_operand.hbm [shape: f32[2,8,128], index: 2, kind: output, shape index: {}]
  %s3 = sld [smem:[#allocation0]]
  $region57: #{tpu_custom_call.1} parent=0
    _
  %s5 = ssub.s32 1, %s3
  %s6 = scalar_select 0, %s5, %s3
  $region1: #{tpu_custom_call.1} parent=0
    #allocation4 [shape = 'u8[16384]{0}', space=vmem, size = 0x4000, scoped, tag = 'input window, operand 0']
    #allocation5 [shape = 's32[2]{0}', space=sflag, size = 0x8, scoped, tag = 'scoped memory for tpu_custom_call.1']
    #allocation6 [shape = 's32[2]{0}', space=sflag, size = 0x8, scoped, tag = 'scoped memory for tpu_custom_call.1']
    #allocation7 [shape = 'u8[2048]{0}', space=vmem, size = 0x800, scoped, tag = 'input window, operand 1']
    #allocation8 [shape = 's32[2]{0}', space=sflag, size = 0x8, scoped, tag = 'scoped memory for tpu_custom_call.1']
    #allocation9 [shape = 'u8[8192]{0}', space=vmem, size = 0x2000, scoped, tag = 'output window, operand 0']
    %7 = vsyncpa [#allocation5], 0
    %s8 = scalar_lea.sflag [#allocation5], 1
    %9 = vsyncpa %s8, 0
    %10 = vsyncpa [#allocation8], 0
    %s11 = scalar_lea.sflag [#allocation8], 1
    %12 = vsyncpa %s11, 0
    %13 = vsyncpa [#allocation6], 0
    %s14 = scalar_lea.sflag [#allocation6], 1
    %15 = vsyncpa %s14, 0
    loop: start=0, step=1, limit=4
    $region2: #{tpu_custom_call.1} parent=1 // loop_pre_header
      _
    $region3: #{tpu_custom_call.1} parent=1 // loop_header
      %s17 = sphi 0, %s21
      %p18 = scmp.ge.s32.totalorder %s17, 4
      %s24 = sphi 0, %s36
      %s25 = sphi 0, %s32
      %s26 = sphi 0, %s24
      %s27 = sphi 0, %s25
      %s28 = sphi 0, %s26
      %s29 = sphi 0, %s27
      %s41 = sphi 0, %s43
      %s44 = sphi 0, %s41
      %s45 = sphi 0, %s44
      %s61 = sphi 0, %s45
      %s69 = sphi 0, %s71
      %s72 = sphi 0, %s69
      %s73 = sphi 0, %s72
      %s89 = sphi 0, %s73
      %s95 = sphi 0, %s97
      %s98 = sphi 0, %s95
      %s99 = sphi 0, %s98
      %s115 = sphi 0, %s99
    $region4: #{tpu_custom_call.1} parent=1 // loop_header_branch
      %20 = sbr.rel (%p18) target = $region8
    $region5: #{tpu_custom_call.1} parent=1 // loop_body
      %s22 = ssub.s32 %s17, 1
      %s23 = ssub.s32 %s17, 2
      %s30 = sadd.s32 1, %s25
      %p31 = scmp.ge.s32.totalorder %s30, 1
      %s32 = scalar_select %p31, 0, %s30
      %s33 = sadd.s32 1, %s24
      %s34 = scalar_select %p31, %s33, %s24
      %p35 = scmp.ge.s32.totalorder %s34, 2
      %s36 = scalar_select %p35, 0, %s34
      %s37 = sadd.s32 %s24, %s25
      %s38 = sadd.s32 %s36, %s32
      %s39 = ssub.s32 %s37, %s38
      %p40 = scmp.eq.s32.totalorder %s39, 0
      %s42 = sadd.s32 %s41, 1
      %s43 = scalar_select %p40, %s41, %s42
      %p46 = pneg %p40
      %p47 = scmp.eq.s32.totalorder %s17, 1
      %p48 = por %p46, %p47
      %p49 = scmp.ne.s32.totalorder %s41, %s44
      %p50 = scmp.eq.s32.totalorder %s17, 0
      %p51 = por %p49, %p50
      %p52 = scmp.ne.s32.totalorder %s41, %s44
      %p53 = scmp.eq.s32.totalorder %s22, 1
      %p54 = por %p52, %p53
      %p55 = scmp.ne.s32.totalorder %s44, %s45
      %p56 = scmp.eq.s32.totalorder %s22, 0
      %p57 = por %p55, %p56
      %p58 = scmp.ne.s32.totalorder %s44, %s45
      %p59 = scmp.eq.s32.totalorder %s23, 1
      %p60 = por %p58, %p59
      %p62 = scmp.ne.s32.totalorder %s45, %s61
      %p63 = scmp.eq.s32.totalorder %s23, 0
      %p64 = por %p62, %p63
      %s65 = sadd.s32 %s24, %s25
      %s66 = sadd.s32 %s36, %s32
      %s67 = ssub.s32 %s65, %s66
      %p68 = scmp.eq.s32.totalorder %s67, 0
      %s70 = sadd.s32 %s69, 1
      %s71 = scalar_select %p68, %s69, %s70
      %p74 = pneg %p68
      %p75 = scmp.eq.s32.totalorder %s17, 1
      %p76 = por %p74, %p75
      %p77 = scmp.ne.s32.totalorder %s69, %s72
      %p78 = scmp.eq.s32.totalorder %s17, 0
      %p79 = por %p77, %p78
      %p80 = scmp.ne.s32.totalorder %s69, %s72
      %p81 = scmp.eq.s32.totalorder %s22, 1
      %p82 = por %p80, %p81
      %p83 = scmp.ne.s32.totalorder %s72, %s73
      %p84 = scmp.eq.s32.totalorder %s22, 0
      %p85 = por %p83, %p84
      %p86 = scmp.ne.s32.totalorder %s72, %s73
      %p87 = scmp.eq.s32.totalorder %s23, 1
      %p88 = por %p86, %p87
      %p90 = scmp.ne.s32.totalorder %s73, %s89
      %p91 = scmp.eq.s32.totalorder %s23, 0
      %p92 = por %p90, %p91
      %s93 = ssub.s32 %s24, %s36
      %p94 = scmp.eq.s32.totalorder %s93, 0
      %s96 = sadd.s32 %s95, 1
      %s97 = scalar_select %p94, %s95, %s96
      %p100 = pneg %p94
      %p101 = scmp.eq.s32.totalorder %s17, 1
      %p102 = por %p100, %p101
      %p103 = scmp.ne.s32.totalorder %s95, %s98
      %p104 = scmp.eq.s32.totalorder %s17, 0
      %p105 = por %p103, %p104
      %p106 = scmp.ne.s32.totalorder %s95, %s98
      %p107 = scmp.eq.s32.totalorder %s22, 1
      %p108 = por %p106, %p107
      %p109 = scmp.ne.s32.totalorder %s98, %s99
      %p110 = scmp.eq.s32.totalorder %s22, 0
      %p111 = por %p109, %p110
      %p112 = scmp.ne.s32.totalorder %s98, %s99
      %p113 = scmp.eq.s32.totalorder %s23, 1
      %p114 = por %p112, %p113
      %p116 = scmp.ne.s32.totalorder %s99, %s115
      %p117 = scmp.eq.s32.totalorder %s23, 0
      %p118 = por %p116, %p117
      %p119 = scmp.le.s32.totalorder 1, %s17
      %p120 = scmp.lt.s32.totalorder %s17, 3
      %p121 = pnand %p119, %p120
      %p122 = pneg %p121
      // Predicated region
      $region9: #{tpu_custom_call.1} parent=5 // pred_check
        _
      $region10: #{tpu_custom_call.1} parent=5 // pred_check_branch
        %124 = sbr.rel (%p121) target = $region12
      $region11: #{tpu_custom_call.1} parent=5 // pred_region
        %s125 = ssub.s32 %s17, 1
      $region12: #{tpu_custom_call.1} parent=5 // pred_fallthru
        _
      %p126 = scmp.lt.s32.totalorder %s17, 2
      // Predicated region
      $region13: #{tpu_custom_call.1} parent=5 // pred_check
        %p127 = pneg %p126
      $region14: #{tpu_custom_call.1} parent=5 // pred_check_branch
        %129 = sbr.rel (%p127) target = $region16
      $region15: #{tpu_custom_call.1} parent=5 // pred_region
        // Predicated region
        $region17: #{tpu_custom_call.1} parent=15 // pred_check
          %p130 = pneg %p51
        $region18: #{tpu_custom_call.1} parent=15 // pred_check_branch
          %132 = sbr.rel (%p130) target = $region20
        $region19: #{tpu_custom_call.1} parent=15 // pred_region
          %s133 = sand.u32 %s41, 1
          %s134 = scalar_lea.sflag [#allocation5], %s133
          %s135 = sand.u32 %s41, 1
          %s136 = smul.addr %s135, 16
          %s137 = scalar_lea.vmem [#allocation4], %s136
          %s138 = sadd.s32 %s24, %s25
          %s139 = smul.u32 2, %s138
          %s141 = ssub.s32 256, 256
          %142 = vsyncadd %s134, %s141
          %s143 = smul.addr %s139, 128
          %s144 = scalar_lea.hbm %s0, %s143
          %s146 = sshll.u32 %s137, 4
          %s147 = int_to_ptr.vmem [resolvable:$true] %s146
          %149 = dma.hbm_to_vmem [thread:$0]  %s144, 256, %s147, %s134
        $region20: #{tpu_custom_call.1} parent=15 // pred_fallthru
          _
        // Predicated region
        $region21: #{tpu_custom_call.1} parent=15 // pred_check
          %p150 = pneg %p79
        $region22: #{tpu_custom_call.1} parent=15 // pred_check_branch
          %152 = sbr.rel (%p150) target = $region24
        $region23: #{tpu_custom_call.1} parent=15 // pred_region
          %s153 = sand.u32 %s69, 1
          %s154 = scalar_lea.sflag [#allocation8], %s153
          %s155 = sand.u32 %s69, 1
          %s156 = smul.addr %s155, 2
          %s157 = scalar_lea.vmem [#allocation7], %s156
          %s158 = sadd.s32 %s24, %s25
          %s159 = smul.u32 2, %s158
          %s161 = ssub.s32 32, 32
          %162 = vsyncadd %s154, %s161
          %s163 = smul.addr %s159, 16
          %s164 = scalar_lea.hbm %s1, %s163
          %s166 = sshll.u32 %s157, 4
          %s167 = int_to_ptr.vmem [resolvable:$true] %s166
          %169 = dma.hbm_to_vmem [thread:$0]  %s164, 32, %s167, %s154
        $region24: #{tpu_custom_call.1} parent=15 // pred_fallthru
          _
      $region16: #{tpu_custom_call.1} parent=5 // pred_fallthru
        _
      %p170 = scmp.le.s32.totalorder 1, %s17
      %p171 = scmp.lt.s32.totalorder %s17, 3
      %p172 = pnand %p170, %p171
      %p173 = pneg %p172
      // Predicated region
      $region25: #{tpu_custom_call.1} parent=5 // pred_check
        _
      $region26: #{tpu_custom_call.1} parent=5 // pred_check_branch
        %175 = sbr.rel (%p172) target = $region28
      $region27: #{tpu_custom_call.1} parent=5 // pred_region
        %s176 = ssub.s32 %s17, 1
        %s177 = sand.u32 %s44, 1
        %s178 = scalar_lea.sflag [#allocation5], %s177
        %s179 = sand.u32 %s44, 1
        %s180 = smul.addr %s179, 16
        %s181 = scalar_lea.vmem [#allocation4], %s180
        // Predicated region
        $region29: #{tpu_custom_call.1} parent=27 // pred_check
          %p182 = pneg %p57
        $region30: #{tpu_custom_call.1} parent=27 // pred_check_branch
          %184 = sbr.rel (%p182) target = $region32
        $region31: #{tpu_custom_call.1} parent=27 // pred_region
          %185 = dma.done %s178, 256
        $region32: #{tpu_custom_call.1} parent=27 // pred_fallthru
          _
        %s186 = sand.u32 %s72, 1
        %s187 = scalar_lea.sflag [#allocation8], %s186
        %s188 = sand.u32 %s72, 1
        %s189 = smul.addr %s188, 2
        %s190 = scalar_lea.vmem [#allocation7], %s189
        // Predicated region
        $region33: #{tpu_custom_call.1} parent=27 // pred_check
          %p191 = pneg %p85
        $region34: #{tpu_custom_call.1} parent=27 // pred_check_branch
          %193 = sbr.rel (%p191) target = $region36
        $region35: #{tpu_custom_call.1} parent=27 // pred_region
          %194 = dma.done %s187, 32
        $region36: #{tpu_custom_call.1} parent=27 // pred_fallthru
          _
        %s195 = sand.u32 %s44, 1
        %s196 = scalar_lea.sflag [#allocation5], %s195
        %s197 = sand.u32 %s44, 1
        %s198 = smul.addr %s197, 16
        %s199 = scalar_lea.vmem [#allocation4], %s198
        %p200 = pneg %p57
        %p201 = pneg %p54
        %s202 = sand.u32 %s72, 1
        %s203 = scalar_lea.sflag [#allocation8], %s202
        %s204 = sand.u32 %s72, 1
        %s205 = smul.addr %s204, 2
        %s206 = scalar_lea.vmem [#allocation7], %s205
        %p207 = pneg %p85
        %p208 = pneg %p82
        %p209 = pneg %p111
        %p210 = pneg %p108
        %s211 = sand.u32 %s98, 1
        %s212 = scalar_lea.sflag [#allocation6], %s211
        %s213 = sand.u32 %s98, 1
        %s214 = smul.addr %s213, 8
        %s215 = scalar_lea.vmem [#allocation9], %s214
        %s216 = sadd.s32 %s26, %s27
        %s217 = smul.u32 2, %s216
        %s218 = sadd.s32 %s26, %s27
        %s219 = smul.u32 2, %s218
        %p220 = scmp.eq.s32.totalorder %s27, 0
        // Predicated region
        $region37: #{tpu_custom_call.1} parent=27 // pred_check
          %p221 = pneg %p220
        $region38: #{tpu_custom_call.1} parent=27 // pred_check_branch
          %223 = sbr.rel (%p221) target = $region40
        $region39: #{tpu_custom_call.1} parent=27 // pred_region
          %v224 = vlaneseq
          %vm225 = vcmp.ge.s32.totalorder %v224, 0
          %vm226 = vcmp.lt.s32.totalorder %v224, 256
          %vm227 = vmand %vm225, %vm226
          %228 = vst.msk [vmem:[#allocation2] sm:$0x3] %vm227, 0.0
          %229 = vst.msk [vmem:[#allocation3] sm:$0x3] %vm227, 0.0
          %230 = vst [vmem:[%s215] sm:$0xff] 0.0
        $region40: #{tpu_custom_call.1} parent=27 // pred_fallthru
          _
        %v231 = vld [vmem:[%s181] sm:$0xff]
        %v232 = vld [vmem:[%s181 + $0x8] sm:$0xff]
        %v233 = vld [vmem:[%s190] sm:$0x3]
        %v234 = vrot.slane %v231, 4
        %v235 = vmax.f32 %v231, %v234
        %v236 = vrot.slane %v235, 2
        %v237 = vmax.f32 %v235, %v236
        %v238 = vrot.slane %v237, 1
        %v239 = vmax.f32 %v237, %v238
        %v240 = vrot.slane %v232, 4
        %v241 = vmax.f32 %v232, %v240
        %v242 = vrot.slane %v241, 2
        %v243 = vmax.f32 %v241, %v242
        %v244 = vrot.slane %v243, 1
        %v245 = vmax.f32 %v243, %v244
        %v246 = vsub.f32 %v231, %v239
        %v247 = vsub.f32 %v232, %v245
        %v248 = vmul.f32 %v246, 1.442695
        %v249 = vpow.pop %v248
        %v250 = vmul.f32 %v247, 1.442695
        %v251 = vpow.pop %v250
        %v252 = vrot.slane %v249, 4
        %v253 = vadd.f32 %v249, %v252
        %v254 = vrot.slane %v253, 2
        %v255 = vadd.f32 %v253, %v254
        %v256 = vrot.slane %v255, 1
        %v257 = vadd.f32 %v255, %v256
        %v258 = vrot.slane %v251, 4
        %v259 = vadd.f32 %v251, %v258
        %v260 = vrot.slane %v259, 2
        %v261 = vadd.f32 %v259, %v260
        %v262 = vrot.slane %v261, 1
        %v263 = vadd.f32 %v261, %v262
        %v264 = vlog2.pop %v257
        %v265 = vmul.f32 %v264, 0.6931472
        %v266 = vlog2.pop %v263
        %v267 = vmul.f32 %v266, 0.6931472
        %v268 = vadd.f32 %v239, %v265
        %v269 = vadd.f32 %v245, %v267
        %v270 = vlaneseq
        %v271 = vshrl.u32 %v270, 7
        %v272 = vlaneseq
        %v273 = vshrl.u32 %v272, 7
        %v274 = vsub.s32 0, %v273
        %v275 = vrot.slane %v233, %v274
        %v276 = vlaneseq
        %v277 = vshrl.u32 %v276, 7
        %v278 = vsub.s32 1, %v277
        %v279 = vrot.slane %v233, %v278
        %vm280 = vcmp.eq.s32.totalorder %v271, %v275
        %vm281 = vcmp.eq.s32.totalorder %v271, %v279
        %v282 = vsel %vm280, %v231, 0.0
        %v283 = vsel %vm281, %v232, 0.0
        %v284 = vrot.slane %v282, 4
        %v285 = vadd.f32 %v282, %v284
        %v286 = vrot.slane %v285, 2
        %v287 = vadd.f32 %v285, %v286
        %v288 = vrot.slane %v287, 1
        %v289 = vadd.f32 %v287, %v288
        %v290 = vrot.slane %v283, 4
        %v291 = vadd.f32 %v283, %v290
        %v292 = vrot.slane %v291, 2
        %v293 = vadd.f32 %v291, %v292
        %v294 = vrot.slane %v293, 1
        %v295 = vadd.f32 %v293, %v294
        %vm296 = vcmp.ne.s32.totalorder %v233, 6
        %v297 = vsel %vm296, 1, 0
        %v298 = vcvt.s32.f32 %v297
        %v299 = vld [vmem:[#allocation2] sm:$0x3]
        %v300 = vsub.f32 %v268, %v289
        %v301 = vsub.f32 %v269, %v295
        %v304 = vcombine.low %v300, %v301
        %v306 = vunpack.c.l.s4 1966171168
        %v307 = vunpack.c.0.s8 %v306
        %v308 = vlaneseq
        %v309 = vshrl.u32 %v308, 7
        %v310 = vsub.s32 %v307, %v309
        %v311 = vrot.slane %v304, %v310
        %v313 = vunpack.c.l.s4 1966171168
        %v314 = vunpack.c.0.s8 %v313
        %v315 = vlaneseq
        %v316 = vshrl.u32 %v315, 7
        %v317 = vsub.s32 %v314, %v316
        %v318 = vrot.slane %v311, %v317
        %v320 = vmul.f32 %v298, %v318
        %v321 = vadd.f32 %v299, %v320
        %v322 = vlaneseq
        %vm323 = vcmp.ge.s32.totalorder %v322, 0
        %vm324 = vcmp.lt.s32.totalorder %v322, 256
        %vm325 = vmand %vm323, %vm324
        %326 = vst.msk [vmem:[#allocation2] sm:$0x3] %vm325, %v321
        %v327 = vld [vmem:[#allocation3] sm:$0x3]
        %v328 = vadd.f32 %v327, %v298
        %329 = vst.msk [vmem:[#allocation3] sm:$0x3] %vm325, %v328
        // Predicated region
        $region41: #{tpu_custom_call.1} parent=27 // pred_check
          %p330 = pneg %p220
        $region42: #{tpu_custom_call.1} parent=27 // pred_check_branch
          %332 = sbr.rel (%p330) target = $region44
        $region43: #{tpu_custom_call.1} parent=27 // pred_region
          %v333 = vld [vmem:[#allocation2] sm:$0x3]
          %v335 = vlaneseq
          %v336 = vshrl.u32 %v335, 7
          %v337 = vsub.s32 0, %v336
          %v338 = vrot.slane %v333, %v337
          %v339 = vlaneseq
          %v340 = vshrl.u32 %v339, 7
          %v341 = vsub.s32 1, %v340
          %v342 = vrot.slane %v333, %v341
          %vm345 = vcmask 1040384
          %v346 = vsel %vm345, %v338, 0.0
          %v347 = vsel %vm345, %v342, 0.0
          %v348 = vadd.f32 %v346, %v347
          %349 = vadd.xlane.f32.xlu0 %v348
          %v350 = vpop.xlane.xlu0 %349
          %v351 = vrot.slane %v350, 4
          %v352 = vadd.f32 %v350, %v351
          %v353 = vrot.slane %v352, 2
          %v354 = vadd.f32 %v352, %v353
          %v355 = vrot.slane %v354, 1
          %v356 = vadd.f32 %v354, %v355
          %s357 = vtos %v356
          %v358 = vld [vmem:[#allocation3] sm:$0x3]
          %v360 = vlaneseq
          %v361 = vshrl.u32 %v360, 7
          %v362 = vsub.s32 0, %v361
          %v363 = vrot.slane %v358, %v362
          %v364 = vlaneseq
          %v365 = vshrl.u32 %v364, 7
          %v366 = vsub.s32 1, %v365
          %v367 = vrot.slane %v358, %v366
          %v370 = vsel %vm345, %v363, 0.0
          %v371 = vsel %vm345, %v367, 0.0
          %v372 = vadd.f32 %v370, %v371
          %373 = vadd.xlane.f32.xlu0 %v372
          %v374 = vpop.xlane.xlu0 %373
          %v375 = vrot.slane %v374, 4
          %v376 = vadd.f32 %v374, %v375
          %v377 = vrot.slane %v376, 2
          %v378 = vadd.f32 %v376, %v377
          %v379 = vrot.slane %v378, 1
          %v380 = vadd.f32 %v378, %v379
          %s381 = vtos %v380
          %v382 = vlaneseq
          %v383 = vand.u32 %v382, 127
          %vm384 = vcmp.eq.s32.totalorder %v271, 0
          %vm385 = vcmp.eq.s32.totalorder %v383, 0
          %vm386 = vmand %vm384, %vm385
          %vm387 = vcmp.eq.s32.totalorder %v383, 1
          %vm388 = vmand %vm384, %vm387
          %v389 = vstv %s381
          %v390 = vsel %vm388, %v389, 0.0
          %v391 = vstv %s357
          %v392 = vsel %vm386, %v391, %v390
          %393 = vst [vmem:[%s215] sm:$0xff] %v392
        $region44: #{tpu_custom_call.1} parent=27 // pred_fallthru
          _
        %s394 = sand.u32 %s98, 1
        %s395 = scalar_lea.sflag [#allocation6], %s394
        %s396 = sand.u32 %s98, 1
        %s397 = smul.addr %s396, 8
        %s398 = scalar_lea.vmem [#allocation9], %s397
        // Predicated region
        $region45: #{tpu_custom_call.1} parent=27 // pred_check
          %p399 = pneg %p108
        $region46: #{tpu_custom_call.1} parent=27 // pred_check_branch
          %401 = sbr.rel (%p399) target = $region48
        $region47: #{tpu_custom_call.1} parent=27 // pred_region
          %s403 = ssub.s32 128, 128
          %404 = vsyncadd %s395, %s403
          %s405 = smul.addr %s26, 128
          %s406 = scalar_lea.hbm %s2, %s405
          %s408 = sshll.u32 %s398, 4
          %s409 = int_to_ptr.vmem [resolvable:$true] %s408
          %411 = dma.vmem_to_hbm [thread:$0]  %s409, 128, %s406, %s395
        $region48: #{tpu_custom_call.1} parent=27 // pred_fallthru
          _
      $region28: #{tpu_custom_call.1} parent=5 // pred_fallthru
        _
      %p412 = scmp.le.s32.totalorder 2, %s17
      // Predicated region
      $region49: #{tpu_custom_call.1} parent=5 // pred_check
        %p413 = pneg %p412
      $region50: #{tpu_custom_call.1} parent=5 // pred_check_branch
        %415 = sbr.rel (%p413) target = $region52
      $region51: #{tpu_custom_call.1} parent=5 // pred_region
        %s416 = ssub.s32 %s17, 2
        // Predicated region
        $region53: #{tpu_custom_call.1} parent=51 // pred_check
          %p417 = pneg %p114
        $region54: #{tpu_custom_call.1} parent=51 // pred_check_branch
          %419 = sbr.rel (%p417) target = $region56
        $region55: #{tpu_custom_call.1} parent=51 // pred_region
          %s420 = sand.u32 %s99, 1
          %s421 = scalar_lea.sflag [#allocation6], %s420
          %s422 = sand.u32 %s99, 1
          %s423 = smul.addr %s422, 8
          %s424 = scalar_lea.vmem [#allocation9], %s423
          %425 = dma.done %s421, 128
        $region56: #{tpu_custom_call.1} parent=51 // pred_fallthru
          _
      $region52: #{tpu_custom_call.1} parent=5 // pred_fallthru
        _
    $region6: #{tpu_custom_call.1} parent=1 // loop_footer
      %s21 = sadd.s32 1, %s17
    $region7: #{tpu_custom_call.1} parent=1 // loop_footer_branch
      %16 = sbr.rel target = $region3
    $region8: #{tpu_custom_call.1} parent=1 // loop_exit
      _
    %426 = vsyncpa [#allocation5], 1
    %s427 = scalar_lea.sflag [#allocation5], 1
    %428 = vsyncpa %s427, 1
    %429 = vsyncpa [#allocation8], 1
    %s430 = scalar_lea.sflag [#allocation8], 1
    %431 = vsyncpa %s430, 1
    %432 = vsyncpa [#allocation6], 1
    %s433 = scalar_lea.sflag [#allocation6], 1
    %434 = vsyncpa %s433, 1

</llo_original>
